<compile_context>
chip_gen: v6e
topology: v6e:2x2x1
jax: 0.10.0
libtpu: 0.0.40
codegen_flags: <defaults>
</compile_context>

<pallas_src>
import jax
import jax.numpy as jnp
from jax.experimental import pallas as pl
from jax.experimental.pallas import tpu as pltpu


def _round_up(n, m):
    return ((n + m - 1) // m) * m


def _cdiv(a, b):
    return -(-a // b)


# ---------------------------------------------------------------------------
# Kernel
# ---------------------------------------------------------------------------
def actor_kernel(x_ref, w1_ref, w2_ref, w3_ref, b_ref, out_ref):
    cdt = w1_ref.dtype                      # matmul operand dtype (f32 or bf16)

    x = x_ref[...]                          # (bb, inp)  f32
    b = b_ref[...]                          # (3, 128)   f32
    b1 = b[0:1, :]                          # (1, 128)
    b2 = b[1:2, :]
    b3 = b[2:3, :]

    # Layer 1: (bb, inp) @ (inp, 128) ; cols 64..127 of W1p are zero-padding.
    h1 = jnp.dot(x.astype(cdt), w1_ref[...],
                 preferred_element_type=jnp.float32) + b1
    h1 = jnp.maximum(h1, 0.0)               # (bb, 128) f32 (cols 64..127 == 0)

    # Layer 2: (bb, 128) @ (128, 128) ; rows 64..127 of W2p are zero-padding.
    h2 = jnp.dot(h1.astype(cdt), w2_ref[...],
                 preferred_element_type=jnp.float32) + b2
    h2 = jnp.maximum(h2, 0.0)               # (bb, 128) f32

    # Layer 3: (bb, 128) @ (128, 128) ; cols 8..127 of W3p are zero-padding.
    op = jnp.dot(h2.astype(cdt), w3_ref[...],
                 preferred_element_type=jnp.float32) + b3   # (bb, 128) f32

    # Lanes 0..3: MVN mean.  Lanes 4..7: exp(log-var) -> covariance diagonal.
    # out_ref is either 128 lanes wide (small B: one unmasked lane-dense vst)
    # or 8 lanes wide (large B: 16x less output HBM traffic); slicing first
    # also keeps the EUP exp work down to the lanes actually stored.
    out_w = out_ref.shape[-1]
    op = op[:, :out_w]
    lane = jax.lax.broadcasted_iota(jnp.int32, op.shape, 1)
    out_ref[...] = jnp.where((lane >= 4) & (lane < 8), jnp.exp(op), op)


# ---------------------------------------------------------------------------
# Parameter init / packing
# ---------------------------------------------------------------------------
def xavier_uniform(key, fan_in, fan_out):
    limit = jnp.sqrt(6.0 / (fan_in + fan_out))
    return jax.random.uniform(key, (fan_in, fan_out), jnp.float32, -limit, limit)


def init_actor_params(key, inp_size):
    """Raw params, (in, out) weight layout (transpose of torch's (out, in))."""
    k1, k2, k3 = jax.random.split(key, 3)
    w1 = xavier_uniform(k1, inp_size, 64)
    b1 = jnp.zeros((64,), jnp.float32)
    w2 = xavier_uniform(k2, 64, 128)
    b2 = jnp.zeros((128,), jnp.float32)
    w3 = xavier_uniform(k3, 128, 8)
    b3 = jnp.zeros((8,), jnp.float32)
    return (w1, b1, w2, b2, w3, b3)


def pack_actor_params(params, matmul_dtype=jnp.bfloat16):
    """Pack weights to lane-aligned (…,128) tiles and stack biases into (3,128).

    Do this ONCE per parameter set (e.g. per target-net sync), not per call.

    matmul_dtype=bf16 is the recommended production path on ALL TPU
    generations (v5e included: its MXU takes bf16 operands at full rate while
    f32 matmuls cost multiple passes, and the weight DMA halves).  Use f32 for
    bit-exact parity with the torch module.  The exp/where trick in the kernel
    relies on W3p cols 8..127 and b3 lanes 8..127 being exactly zero, which
    this function guarantees.
    """
    w1, b1, w2, b2, w3, b3 = params
    inp = w1.shape[0]
    w1p = jnp.zeros((inp, 128), jnp.float32).at[:, :64].set(w1)
    w2p = jnp.zeros((128, 128), jnp.float32).at[:64, :].set(w2)
    w3p = jnp.zeros((128, 128), jnp.float32).at[:, :8].set(w3)
    bp = (jnp.zeros((3, 128), jnp.float32)
          .at[0, :64].set(b1)
          .at[1, :].set(b2)
          .at[2, :8].set(b3))
    return (w1p.astype(matmul_dtype),
            w2p.astype(matmul_dtype),
            w3p.astype(matmul_dtype),
            bp)                              # biases stay f32 (f32 VPU adds)


# ---------------------------------------------------------------------------
# Device-aware block-size selection
# ---------------------------------------------------------------------------
def _tpu_caps():
    """Best-effort (tensorcores_per_chip, scoped_vmem_default_bytes)."""
    num_tc, scoped = 1, 32 << 20                 # v6e-style defaults
    try:
        kind = jax.devices()[0].device_kind.lower()
    except Exception:
        kind = ""
    if "v7" in kind:
        num_tc = 2                               # v7x: 2 TCs/chip (megacore)
    if ("v5e" in kind) or ("v5 lite" in kind) or ("v5litepod" in kind):
        scoped = 16 << 20                        # v5e scoped-VMEM default
    return num_tc, scoped


def _pick_layout(B, inp, out_lanes, num_tc, scoped_vmem):
    """Pick (n_blocks, bb, B_grid).

    * single-TC chips: one grid step whenever the whole batch fits the
      VMEM budget (removes per-step overhead entirely);
    * v7x: even-length grid so the "parallel" axis feeds both TensorCores;
    * bb capped (<= 8192 rows and by scoped VMEM) so double-buffered blocks
      plus the three (bb,128) f32 intermediates never spill;
    * exact tilings preferred so the wrapper avoids a full jnp.pad copy of X.
    """
    B_pad = _round_up(B, 8)
    units = B_pad // 8
    # Per-row VMEM: 2x input block + 2x output block (double buffered) plus
    # three (bb,128) f32 intermediates (h1/h2/op).
    per_row = 2 * inp * 4 + 2 * out_lanes * 4 + 3 * 128 * 4
    budget = max(1 << 20, scoped_vmem - (2 << 20))   # headroom for weights etc.
    cap_rows = max(8, min(8192, budget // per_row))
    cap_units = max(1, cap_rows // 8)

    step = 2 if num_tc == 2 else 1
    n_start = max(num_tc, _cdiv(units, cap_units))
    if num_tc == 2 and n_start % 2:
        n_start += 1
    # Prefer an exact tiling (no padded copy of X).
    for n in range(n_start, n_start + 16 * step, step):
        if units % n == 0 and units // n <= cap_units:
            return n, (units // n) * 8, B_pad
    # Fallback: pad the tail with a few extra rows.
    bb_units = _cdiv(units, n_start)
    return n_start, bb_units * 8, n_start * bb_units * 8


# ---------------------------------------------------------------------------
# Wrapper
# ---------------------------------------------------------------------------
def actor_forward(x, packed_params):
    """x: (inp_size,) or (B, inp_size) float32.

    Returns (mean, cov_diag): shapes (4,)/(4,) for a single sample,
    (B,4)/(B,4) for a batch.
    """
    w1p, w2p, w3p, bp = packed_params
    inp = w1p.shape[0]

    single = (x.ndim == 1)
    x2 = x[None, :] if single else x
    B = x2.shape[0]
    assert x2.shape[1] == inp

    num_tc, scoped_vmem = _tpu_caps()
    # Narrow 8-lane output for large batches (16x less writeback HBM traffic,
    # which dominates at rollout scale); lane-dense 128-wide unmasked stores
    # for small batches where masked stores would just add overhead.
    out_lanes = 8 if B >= 1024 else 128

    n_blocks, bb, B_grid = _pick_layout(B, inp, out_lanes, num_tc, scoped_vmem)

    x2 = x2.astype(jnp.float32)
    if B_grid != B:
        x2 = jnp.pad(x2, ((0, B_grid - B), (0, 0)))

    w_bytes = int((w1p.size + w2p.size + w3p.size) * jnp.dtype(w1p.dtype).itemsize
                  + bp.size * 4)
    cost = pl.CostEstimate(
        flops=2 * B_grid * (inp * 64 + 64 * 128 + 128 * 8),
        transcendentals=B_grid * 4,
        bytes_accessed=B_grid * inp * 4 + B_grid * out_lanes * 4 + w_bytes,
    )

    out = pl.pallas_call(
        actor_kernel,
        out_shape=jax.ShapeDtypeStruct((B_grid, out_lanes), jnp.float32),
        grid=(n_blocks,),
        in_specs=[
            pl.BlockSpec((bb, inp), lambda i: (i, 0)),     # activations: walk batch
            pl.BlockSpec((inp, 128), lambda i: (0, 0)),    # weights: constant ->
            pl.BlockSpec((128, 128), lambda i: (0, 0)),    #   VMEM-resident across
            pl.BlockSpec((128, 128), lambda i: (0, 0)),    #   all grid steps
            pl.BlockSpec((3, 128), lambda i: (0, 0)),      # stacked biases
        ],
        out_specs=pl.BlockSpec((bb, out_lanes), lambda i: (i, 0)),
        compiler_params=pltpu.CompilerParams(
            dimension_semantics=("parallel",)),            # v7x: shard over 2 TCs
        cost_estimate=cost,
    )(x2, w1p, w2p, w3p, bp)

    mean = out[:B, :4]
    cov_diag = out[:B, 4:8]
    if single:
        return mean[0], cov_diag[0]
    return mean, cov_diag


# ---------------------------------------------------------------------------
# Pure-JAX reference (exact f32 semantics of the torch module's hot path)
# ---------------------------------------------------------------------------
def actor_reference(x, params):
    w1, b1, w2, b2, w3, b3 = params
    x2 = x[None, :] if x.ndim == 1 else x
    h1 = jnp.maximum(x2 @ w1 + b1, 0.0)
    h2 = jnp.maximum(h1 @ w2 + b2, 0.0)
    op = h2 @ w3 + b3
    mean, cov = op[:, :4], jnp.exp(op[:, 4:])
    if x.ndim == 1:
        return mean[0], cov[0]
    return mean, cov


if __name__ == "__main__":
    inp_size = 32

    key = jax.random.PRNGKey(0)
    k_params, k_x = jax.random.split(key)
    params = init_actor_params(k_params, inp_size)

    packed_f32 = pack_actor_params(params, jnp.float32)   # exact torch parity
    packed_bf16 = pack_actor_params(params)               # bf16 default (all gens)

    # --- small batch: lane-dense 128-wide output, single grid step on
    #     v5e/v6e, 2-step parallel grid on v7x ------------------------------
    B = 256
    xb = jax.random.normal(k_x, (B, inp_size), jnp.float32)
    mean, cov_diag = actor_forward(xb, packed_f32)
    jax.block_until_ready((mean, cov_diag))

    ref_mean, ref_cov = actor_reference(xb, params)
    assert jnp.allclose(mean, ref_mean, atol=1e-5, rtol=1e-5)
    assert jnp.allclose(cov_diag, ref_cov, atol=1e-5, rtol=1e-5)

    # --- single-sample path (original torch forward: X of shape (inp_size,)) -
    m1, c1 = actor_forward(xb[0], packed_f32)
    jax.block_until_ready((m1, c1))
    assert jnp.allclose(m1, ref_mean[0], atol=1e-5, rtol=1e-5)
    assert jnp.allclose(c1, ref_cov[0], atol=1e-5, rtol=1e-5)

    # --- ragged batch (exercises the pad-tail fallback) ----------------------
    mr, cr = actor_forward(xb[:100], packed_f32)
    jax.block_until_ready((mr, cr))
    assert jnp.allclose(mr, ref_mean[:100], atol=1e-5, rtol=1e-5)
    assert jnp.allclose(cr, ref_cov[:100], atol=1e-5, rtol=1e-5)

    # --- larger batch: narrow 8-lane output path, f32 and bf16 weights -------
    B2 = 2048
    xl = jax.random.normal(jax.random.PRNGKey(1), (B2, inp_size), jnp.float32)
    rm, rc = actor_reference(xl, params)

    ml32, cl32 = actor_forward(xl, packed_f32)
    jax.block_until_ready((ml32, cl32))
    assert jnp.allclose(ml32, rm, atol=1e-5, rtol=1e-5)
    assert jnp.allclose(cl32, rc, atol=1e-5, rtol=1e-5)

    mlb, clb = actor_forward(xl, packed_bf16)              # bf16 MXU fast path
    jax.block_until_ready((mlb, clb))
    assert jnp.allclose(mlb, rm, atol=5e-2, rtol=5e-2)
    assert jnp.allclose(clb, rc, atol=5e-2, rtol=5e-2)

    print("KERNEL_OK")
</pallas_src>

<mosaic_0001>
module attributes {stable_mosaic.version = 11 : i64} {
  func.func @actor_kernel(%arg0: i32, %arg1: memref<256x32xf32, #tpu.memory_space<vmem>>, %arg2: memref<32x128xf32, #tpu.memory_space<vmem>>, %arg3: memref<128x128xf32, #tpu.memory_space<vmem>>, %arg4: memref<128x128xf32, #tpu.memory_space<vmem>>, %arg5: memref<3x128xf32, #tpu.memory_space<vmem>>, %arg6: memref<256x128xf32, #tpu.memory_space<vmem>>) attributes {dimension_semantics = [#tpu.dimension_semantics<parallel>], iteration_bounds = array<i64: 1>, scalar_prefetch = 0 : i64, scratch_operands = 0 : i64, tpu.core_type = #tpu.core_type<tc>, window_params = [{transform_indices = @transform_0, window_bounds = array<i64: 256, 32>}, {pipeline_mode = #tpu.pipeline_mode<synchronous>, transform_indices = @transform_1, window_bounds = array<i64: 32, 128>}, {pipeline_mode = #tpu.pipeline_mode<synchronous>, transform_indices = @transform_2, window_bounds = array<i64: 128, 128>}, {pipeline_mode = #tpu.pipeline_mode<synchronous>, transform_indices = @transform_3, window_bounds = array<i64: 128, 128>}, {pipeline_mode = #tpu.pipeline_mode<synchronous>, transform_indices = @transform_4, window_bounds = array<i64: 3, 128>}, {transform_indices = @transform_5, window_bounds = array<i64: 256, 128>}]} {
    %c0 = arith.constant 0 : index
    %c0_0 = arith.constant 0 : index
    %0 = vector.load %arg1[%c0, %c0_0] : memref<256x32xf32, #tpu.memory_space<vmem>>, vector<256x32xf32>
    %c0_1 = arith.constant 0 : index
    %c0_2 = arith.constant 0 : index
    %1 = vector.load %arg5[%c0_1, %c0_2] : memref<3x128xf32, #tpu.memory_space<vmem>>, vector<3x128xf32>
    %2 = vector.extract_strided_slice %1 {offsets = [0, 0], sizes = [1, 128], strides = [1, 1]} : vector<3x128xf32> to vector<1x128xf32>
    %3 = vector.extract_strided_slice %1 {offsets = [1, 0], sizes = [1, 128], strides = [1, 1]} : vector<3x128xf32> to vector<1x128xf32>
    %4 = vector.extract_strided_slice %1 {offsets = [2, 0], sizes = [1, 128], strides = [1, 1]} : vector<3x128xf32> to vector<1x128xf32>
    %c0_3 = arith.constant 0 : index
    %c0_4 = arith.constant 0 : index
    %5 = vector.load %arg2[%c0_3, %c0_4] : memref<32x128xf32, #tpu.memory_space<vmem>>, vector<32x128xf32>
    %cst = arith.constant dense<0.000000e+00> : vector<256x128xf32>
    %6 = tpu.matmul %0, %5, %cst {dimension_numbers = #tpu.dot_dimension_numbers<[1], [0], [0], [1], [0, 0, 1, 1], [], []>} : vector<256x32xf32>, vector<32x128xf32>, vector<256x128xf32> -> vector<256x128xf32>
    %7 = vector.broadcast %2 : vector<1x128xf32> to vector<256x128xf32>
    %8 = arith.addf %6, %7 : vector<256x128xf32>
    %cst_5 = arith.constant 0.000000e+00 : f32
    %9 = vector.broadcast %cst_5 : f32 to vector<256x128xf32>
    %10 = arith.maximumf %8, %9 : vector<256x128xf32>
    %c0_6 = arith.constant 0 : index
    %c0_7 = arith.constant 0 : index
    %11 = vector.load %arg3[%c0_6, %c0_7] : memref<128x128xf32, #tpu.memory_space<vmem>>, vector<128x128xf32>
    %cst_8 = arith.constant dense<0.000000e+00> : vector<256x128xf32>
    %12 = tpu.matmul %10, %11, %cst_8 {dimension_numbers = #tpu.dot_dimension_numbers<[1], [0], [0], [1], [0, 0, 1, 1], [], []>} : vector<256x128xf32>, vector<128x128xf32>, vector<256x128xf32> -> vector<256x128xf32>
    %13 = vector.broadcast %3 : vector<1x128xf32> to vector<256x128xf32>
    %14 = arith.addf %12, %13 : vector<256x128xf32>
    %cst_9 = arith.constant 0.000000e+00 : f32
    %15 = vector.broadcast %cst_9 : f32 to vector<256x128xf32>
    %16 = arith.maximumf %14, %15 : vector<256x128xf32>
    %c0_10 = arith.constant 0 : index
    %c0_11 = arith.constant 0 : index
    %17 = vector.load %arg4[%c0_10, %c0_11] : memref<128x128xf32, #tpu.memory_space<vmem>>, vector<128x128xf32>
    %cst_12 = arith.constant dense<0.000000e+00> : vector<256x128xf32>
    %18 = tpu.matmul %16, %17, %cst_12 {dimension_numbers = #tpu.dot_dimension_numbers<[1], [0], [0], [1], [0, 0, 1, 1], [], []>} : vector<256x128xf32>, vector<128x128xf32>, vector<256x128xf32> -> vector<256x128xf32>
    %19 = vector.broadcast %4 : vector<1x128xf32> to vector<256x128xf32>
    %20 = arith.addf %18, %19 : vector<256x128xf32>
    %21 = tpu.iota {dimensions = array<i32: 1>} : vector<256x128xi32>
    %c4_i32 = arith.constant 4 : i32
    %22 = vector.broadcast %c4_i32 : i32 to vector<256x128xi32>
    %23 = arith.cmpi sge, %21, %22 : vector<256x128xi32>
    %c8_i32 = arith.constant 8 : i32
    %24 = vector.broadcast %c8_i32 : i32 to vector<256x128xi32>
    %25 = arith.cmpi slt, %21, %24 : vector<256x128xi32>
    %26 = arith.andi %23, %25 : vector<256x128xi1>
    %27 = math.exp %20 : vector<256x128xf32>
    %28 = arith.select %26, %27, %20 : vector<256x128xi1>, vector<256x128xf32>
    %c0_13 = arith.constant 0 : index
    %c0_14 = arith.constant 0 : index
    %29 = vector.load %arg6[%c0_13, %c0_14] : memref<256x128xf32, #tpu.memory_space<vmem>>, vector<256x128xf32>
    tpu.vector_store %arg6[%c0_13, %c0_14], %28 {strides = array<i32>} : memref<256x128xf32, #tpu.memory_space<vmem>>, vector<256x128xf32>,
    return
  }
  func.func @transform_0(%arg0: i32) -> (i32, i32) {
    %c0_i32 = arith.constant 0 : i32
    %c0_i32_0 = arith.constant 0 : i32
    return %arg0, %c0_i32 : i32, i32
  }
  func.func @transform_1(%arg0: i32) -> (i32, i32) {
    %c0_i32 = arith.constant 0 : i32
    %c0_i32_0 = arith.constant 0 : i32
    %c0_i32_1 = arith.constant 0 : i32
    return %c0_i32, %c0_i32_0 : i32, i32
  }
  func.func @transform_2(%arg0: i32) -> (i32, i32) {
    %c0_i32 = arith.constant 0 : i32
    %c0_i32_0 = arith.constant 0 : i32
    %c0_i32_1 = arith.constant 0 : i32
    return %c0_i32, %c0_i32_0 : i32, i32
  }
  func.func @transform_3(%arg0: i32) -> (i32, i32) {
    %c0_i32 = arith.constant 0 : i32
    %c0_i32_0 = arith.constant 0 : i32
    %c0_i32_1 = arith.constant 0 : i32
    return %c0_i32, %c0_i32_0 : i32, i32
  }
  func.func @transform_4(%arg0: i32) -> (i32, i32) {
    %c0_i32 = arith.constant 0 : i32
    %c0_i32_0 = arith.constant 0 : i32
    %c0_i32_1 = arith.constant 0 : i32
    return %c0_i32, %c0_i32_0 : i32, i32
  }
  func.func @transform_5(%arg0: i32) -> (i32, i32) {
    %c0_i32 = arith.constant 0 : i32
    %c0_i32_0 = arith.constant 0 : i32
    return %arg0, %c0_i32 : i32, i32
  }
}

</mosaic_0001>

<llo_original>
// kernel: tpu_custom_call.1
$region0: #{tpu_custom_call.1}
  #allocation0 [shape = 'u32[]', space=smem, size = 0x4, offset = 0x4, fixed_abs, tag = 'smem constant byte address 0x4 - core index']
  #allocation1 [shape = 'u32[144,128]{1,0:T(1,128)}', space=vmem, size = 0x12000, scoped, tag = 'internal scratch']
  %s0 = inlined_call_operand.vmem [shape: f32[256,32], index: 0, kind: input, shape index: {}]
  %s1 = inlined_call_operand.vmem [shape: f32[32,128], index: 1, kind: input, shape index: {}]
  %s2 = inlined_call_operand.vmem [shape: f32[128,128], index: 2, kind: input, shape index: {}]
  %s3 = inlined_call_operand.vmem [shape: f32[128,128], index: 3, kind: input, shape index: {}]
  %s4 = inlined_call_operand.vmem [shape: f32[3,128], index: 4, kind: input, shape index: {}]
  %s5 = inlined_call_operand.hbm [shape: f32[256,128], index: 5, kind: output, shape index: {}]
  %s6 = sld [smem:[#allocation0]]
  $region30: #{tpu_custom_call.1} parent=0
    _
  %s8 = ssub.s32 1, %s6
  %s9 = scalar_select 0, %s8, %s6
  $region1: #{tpu_custom_call.1} parent=0
    #allocation2 [shape = 'u8[131072]{0}', space=vmem, size = 0x20000, scoped, tag = 'output window, operand 0, single buffered']
    #allocation3 [shape = 's32[1]{0}', space=sflag, size = 0x4, scoped, tag = 'scoped memory for tpu_custom_call.1']
    %10 = vsyncpa [#allocation3], 0
    // Predicated region
    $region2: #{tpu_custom_call.1} parent=1 // pred_check
      _
    $region3: #{tpu_custom_call.1} parent=1 // pred_check_branch
      %12 = sbr.rel (0) target = $region5
    $region4: #{tpu_custom_call.1} parent=1 // pred_region
      _
    $region5: #{tpu_custom_call.1} parent=1 // pred_fallthru
      _
    // Predicated region
    $region6: #{tpu_custom_call.1} parent=1 // pred_check
      _
    $region7: #{tpu_custom_call.1} parent=1 // pred_check_branch
      %14 = sbr.rel (0) target = $region9
    $region8: #{tpu_custom_call.1} parent=1 // pred_region
      _
    $region9: #{tpu_custom_call.1} parent=1 // pred_fallthru
      _
    // Predicated region
    $region10: #{tpu_custom_call.1} parent=1 // pred_check
      _
    $region11: #{tpu_custom_call.1} parent=1 // pred_check_branch
      %16 = sbr.rel (0) target = $region13
    $region12: #{tpu_custom_call.1} parent=1 // pred_region
      _
    $region13: #{tpu_custom_call.1} parent=1 // pred_fallthru
      _
    // Predicated region
    $region14: #{tpu_custom_call.1} parent=1 // pred_check
      _
    $region15: #{tpu_custom_call.1} parent=1 // pred_check_branch
      %18 = sbr.rel (0) target = $region17
    $region16: #{tpu_custom_call.1} parent=1 // pred_region
      _
    $region17: #{tpu_custom_call.1} parent=1 // pred_fallthru
      _
    // Predicated region
    $region18: #{tpu_custom_call.1} parent=1 // pred_check
      _
    $region19: #{tpu_custom_call.1} parent=1 // pred_check_branch
      %20 = sbr.rel (0) target = $region21
    $region20: #{tpu_custom_call.1} parent=1 // pred_region
      _
    $region21: #{tpu_custom_call.1} parent=1 // pred_fallthru
      _
    %v21 = vld [vmem:[%s0] sm:$0xff]
    %v22 = vld [vmem:[%s0 + $0x8] sm:$0xff]
    %v23 = vld [vmem:[%s0 + $0x10] sm:$0xff]
    %v24 = vld [vmem:[%s0 + $0x18] sm:$0xff]
    %v25 = vld [vmem:[%s0 + $0x20] sm:$0xff]
    %v26 = vld [vmem:[%s0 + $0x28] sm:$0xff]
    %v27 = vld [vmem:[%s0 + $0x30] sm:$0xff]
    %v28 = vld [vmem:[%s0 + $0x38] sm:$0xff]
    %v29 = vld [vmem:[%s0 + $0x40] sm:$0xff]
    %v30 = vld [vmem:[%s0 + $0x48] sm:$0xff]
    %v31 = vld [vmem:[%s0 + $0x50] sm:$0xff]
    %v32 = vld [vmem:[%s0 + $0x58] sm:$0xff]
    %v33 = vld [vmem:[%s0 + $0x60] sm:$0xff]
    %v34 = vld [vmem:[%s0 + $0x68] sm:$0xff]
    %v35 = vld [vmem:[%s0 + $0x70] sm:$0xff]
    %v36 = vld [vmem:[%s0 + $0x78] sm:$0xff]
    %v37 = vld [vmem:[%s0 + $0x80] sm:$0xff]
    %v38 = vld [vmem:[%s0 + $0x88] sm:$0xff]
    %v39 = vld [vmem:[%s0 + $0x90] sm:$0xff]
    %v40 = vld [vmem:[%s0 + $0x98] sm:$0xff]
    %v41 = vld [vmem:[%s0 + $0xa0] sm:$0xff]
    %v42 = vld [vmem:[%s0 + $0xa8] sm:$0xff]
    %v43 = vld [vmem:[%s0 + $0xb0] sm:$0xff]
    %v44 = vld [vmem:[%s0 + $0xb8] sm:$0xff]
    %v45 = vld [vmem:[%s0 + $0xc0] sm:$0xff]
    %v46 = vld [vmem:[%s0 + $0xc8] sm:$0xff]
    %v47 = vld [vmem:[%s0 + $0xd0] sm:$0xff]
    %v48 = vld [vmem:[%s0 + $0xd8] sm:$0xff]
    %v49 = vld [vmem:[%s0 + $0xe0] sm:$0xff]
    %v50 = vld [vmem:[%s0 + $0xe8] sm:$0xff]
    %v51 = vld [vmem:[%s0 + $0xf0] sm:$0xff]
    %v52 = vld [vmem:[%s0 + $0xf8] sm:$0xff]
    %v53 = vld [vmem:[%s4] sm:$0x7]
    %v54 = vld [vmem:[%s1] sm:$0xff]
    %v55 = vld [vmem:[%s1 + $0x8] sm:$0xff]
    %v56 = vld [vmem:[%s1 + $0x10] sm:$0xff]
    %v57 = vld [vmem:[%s1 + $0x18] sm:$0xff]
    %v58 = vlaneseq
    %v59 = vshrl.u32 %v58, 7
    %v60 = vsub.s32 0, %v59
    %v61 = vrot.slane %v53, %v60
    %vm62 = vcmask 261120
    %v64 = vsel %vm62, %v21, 0
    %v67 = vsel %vm62, %v22, 0
    %v70 = vsel %vm62, %v23, 0
    %v73 = vsel %vm62, %v24, 0
    %v76 = vsel %vm62, %v25, 0
    %v79 = vsel %vm62, %v26, 0
    %v82 = vsel %vm62, %v27, 0
    %v85 = vsel %vm62, %v28, 0
    %v88 = vsel %vm62, %v29, 0
    %v91 = vsel %vm62, %v30, 0
    %v94 = vsel %vm62, %v31, 0
    %v97 = vsel %vm62, %v32, 0
    %v100 = vsel %vm62, %v33, 0
    %v103 = vsel %vm62, %v34, 0
    %v106 = vsel %vm62, %v35, 0
    %v109 = vsel %vm62, %v36, 0
    %v112 = vsel %vm62, %v37, 0
    %v115 = vsel %vm62, %v38, 0
    %v118 = vsel %vm62, %v39, 0
    %v121 = vsel %vm62, %v40, 0
    %v124 = vsel %vm62, %v41, 0
    %v127 = vsel %vm62, %v42, 0
    %v130 = vsel %vm62, %v43, 0
    %v133 = vsel %vm62, %v44, 0
    %v136 = vsel %vm62, %v45, 0
    %v139 = vsel %vm62, %v46, 0
    %v142 = vsel %vm62, %v47, 0
    %v145 = vsel %vm62, %v48, 0
    %v148 = vsel %vm62, %v49, 0
    %v151 = vsel %vm62, %v50, 0
    %v154 = vsel %vm62, %v51, 0
    %v157 = vsel %vm62, %v52, 0
    %159 = vmatprep.subr.mxu0 0.0
    %160 = vmatpush1.msra.mxu0 0.0
    %161 = vmatprep.subr.mxu0 0.0
    %162 = vmatpush1.msra.mxu0 0.0
    %163 = vmatprep.subr.mxu0 0.0
    %164 = vmatpush1.msra.mxu0 0.0
    %165 = vmatprep.subr.mxu0 0.0
    %166 = vmatpush1.msra.mxu0 0.0
    %167 = vmatprep.subr.mxu0 0.0
    %168 = vmatpush1.msra.mxu0 0.0
    %169 = vmatprep.subr.mxu0 0.0
    %170 = vmatpush1.msra.mxu0 0.0
    %171 = vmatprep.subr.mxu0 0.0
    %172 = vmatpush1.msra.mxu0 0.0
    %173 = vmatprep.subr.mxu0 0.0
    %174 = vmatpush1.msra.mxu0 0.0
    %175 = vmatprep.subr.mxu0 0.0
    %176 = vmatpush1.msra.mxu0 0.0
    %177 = vmatprep.subr.mxu0 0.0
    %178 = vmatpush1.msra.mxu0 0.0
    %179 = vmatprep.subr.mxu0 0.0
    %180 = vmatpush1.msra.mxu0 0.0
    %181 = vmatprep.subr.mxu0 0.0
    %182 = vmatpush1.msra.mxu0 0.0
    %183 = vmatprep.subr.mxu0 0.0
    %184 = vmatpush1.msra.mxu0 %v57
    %185 = vmatprep.subr.mxu0 0.0
    %186 = vmatpush1.msra.mxu0 %v56
    %187 = vmatprep.subr.mxu0 0.0
    %188 = vmatpush1.msra.mxu0 %v55
    %189 = vmatprep.subr.mxu0 0.0
    %190 = vmatpush1.msra.mxu0 %v54
    %191 = vmatprep.subr.mxu0 0.0
    %192 = vmatpush2.msra.mxu0 0.0
    %193 = vmatprep.subr.mxu0 0.0
    %194 = vmatpush2.msra.mxu0 0.0
    %195 = vmatprep.subr.mxu0 0.0
    %196 = vmatpush2.msra.mxu0 0.0
    %197 = vmatprep.subr.mxu0 0.0
    %198 = vmatpush2.msra.mxu0 0.0
    %199 = vmatprep.subr.mxu0 0.0
    %200 = vmatpush2.msra.mxu0 0.0
    %201 = vmatprep.subr.mxu0 0.0
    %202 = vmatpush2.msra.mxu0 0.0
    %203 = vmatprep.subr.mxu0 0.0
    %204 = vmatpush2.msra.mxu0 0.0
    %205 = vmatprep.subr.mxu0 0.0
    %206 = vmatpush2.msra.mxu0 0.0
    %207 = vmatprep.subr.mxu0 0.0
    %208 = vmatpush2.msra.mxu0 0.0
    %209 = vmatprep.subr.mxu0 0.0
    %210 = vmatpush2.msra.mxu0 0.0
    %211 = vmatprep.subr.mxu0 0.0
    %212 = vmatpush2.msra.mxu0 0.0
    %213 = vmatprep.subr.mxu0 0.0
    %214 = vmatpush2.msra.mxu0 0.0
    %215 = vmatprep.subr.mxu0 0.0
    %216 = vmatpush2.msra.mxu0 0.0
    %217 = vmatprep.subr.mxu0 0.0
    %218 = vmatpush2.msra.mxu0 0.0
    %219 = vmatprep.subr.mxu0 0.0
    %220 = vmatpush2.msra.mxu0 0.0
    %221 = vmatprep.subr.mxu0 0.0
    %222 = vmatpush2.msra.mxu0 0.0
    %223 = vmatprep.mubr.f32.mxu0 0.0
    %224 = vmatmul.mubr.f32.gmra.mxu0 %v64
    %v225 = vpop.f32.mrf.mxu0
    %v226 = vadd.f32 %v61, %v225
    %v227 = vpop.f32.mrf.mxu0
    %228 = vmatprep.mubr.f32.mxu0 0.0
    %229 = vmatmul.mubr.f32.gmra.mxu0 %v67
    %v230 = vpop.f32.mrf.mxu0
    %v231 = vadd.f32 %v61, %v230
    %v232 = vpop.f32.mrf.mxu0
    %233 = vmatprep.mubr.f32.mxu0 0.0
    %234 = vmatmul.mubr.f32.gmra.mxu0 %v70
    %v235 = vpop.f32.mrf.mxu0
    %v236 = vadd.f32 %v61, %v235
    %v237 = vpop.f32.mrf.mxu0
    %238 = vmatprep.mubr.f32.mxu0 0.0
    %239 = vmatmul.mubr.f32.gmra.mxu0 %v73
    %v240 = vpop.f32.mrf.mxu0
    %v241 = vadd.f32 %v61, %v240
    %v242 = vpop.f32.mrf.mxu0
    %243 = vmatprep.mubr.f32.mxu0 0.0
    %244 = vmatmul.mubr.f32.gmra.mxu0 %v76
    %v245 = vpop.f32.mrf.mxu0
    %v246 = vadd.f32 %v61, %v245
    %v247 = vpop.f32.mrf.mxu0
    %248 = vmatprep.mubr.f32.mxu0 0.0
    %249 = vmatmul.mubr.f32.gmra.mxu0 %v79
    %v250 = vpop.f32.mrf.mxu0
    %v251 = vadd.f32 %v61, %v250
    %v252 = vpop.f32.mrf.mxu0
    %253 = vmatprep.mubr.f32.mxu0 0.0
    %254 = vmatmul.mubr.f32.gmra.mxu0 %v82
    %v255 = vpop.f32.mrf.mxu0
    %v256 = vadd.f32 %v61, %v255
    %v257 = vpop.f32.mrf.mxu0
    %258 = vmatprep.mubr.f32.mxu0 0.0
    %259 = vmatmul.mubr.f32.gmra.mxu0 %v85
    %v260 = vpop.f32.mrf.mxu0
    %v261 = vadd.f32 %v61, %v260
    %v262 = vpop.f32.mrf.mxu0
    %263 = vmatprep.mubr.f32.mxu0 0.0
    %264 = vmatmul.mubr.f32.gmra.mxu0 %v88
    %v265 = vpop.f32.mrf.mxu0
    %v266 = vadd.f32 %v61, %v265
    %v267 = vpop.f32.mrf.mxu0
    %268 = vmatprep.mubr.f32.mxu0 0.0
    %269 = vmatmul.mubr.f32.gmra.mxu0 %v91
    %v270 = vpop.f32.mrf.mxu0
    %v271 = vadd.f32 %v61, %v270
    %v272 = vpop.f32.mrf.mxu0
    %273 = vmatprep.mubr.f32.mxu0 0.0
    %274 = vmatmul.mubr.f32.gmra.mxu0 %v94
    %v275 = vpop.f32.mrf.mxu0
    %v276 = vadd.f32 %v61, %v275
    %v277 = vpop.f32.mrf.mxu0
    %278 = vmatprep.mubr.f32.mxu0 0.0
    %279 = vmatmul.mubr.f32.gmra.mxu0 %v97
    %v280 = vpop.f32.mrf.mxu0
    %v281 = vadd.f32 %v61, %v280
    %v282 = vpop.f32.mrf.mxu0
    %283 = vmatprep.mubr.f32.mxu0 0.0
    %284 = vmatmul.mubr.f32.gmra.mxu0 %v100
    %v285 = vpop.f32.mrf.mxu0
    %v286 = vadd.f32 %v61, %v285
    %v287 = vpop.f32.mrf.mxu0
    %288 = vmatprep.mubr.f32.mxu0 0.0
    %289 = vmatmul.mubr.f32.gmra.mxu0 %v103
    %v290 = vpop.f32.mrf.mxu0
    %v291 = vadd.f32 %v61, %v290
    %v292 = vpop.f32.mrf.mxu0
    %293 = vmatprep.mubr.f32.mxu0 0.0
    %294 = vmatmul.mubr.f32.gmra.mxu0 %v106
    %v295 = vpop.f32.mrf.mxu0
    %v296 = vadd.f32 %v61, %v295
    %v297 = vpop.f32.mrf.mxu0
    %298 = vmatprep.mubr.f32.mxu0 0.0
    %299 = vmatmul.mubr.f32.gmra.mxu0 %v109
    %v300 = vpop.f32.mrf.mxu0
    %v301 = vadd.f32 %v61, %v300
    %v302 = vpop.f32.mrf.mxu0
    %303 = vmatprep.mubr.f32.mxu0 0.0
    %304 = vmatmul.mubr.f32.gmra.mxu0 %v112
    %v305 = vpop.f32.mrf.mxu0
    %v306 = vadd.f32 %v61, %v305
    %v307 = vpop.f32.mrf.mxu0
    %308 = vmatprep.mubr.f32.mxu0 0.0
    %309 = vmatmul.mubr.f32.gmra.mxu0 %v115
    %v310 = vpop.f32.mrf.mxu0
    %v311 = vadd.f32 %v61, %v310
    %v312 = vpop.f32.mrf.mxu0
    %313 = vmatprep.mubr.f32.mxu0 0.0
    %314 = vmatmul.mubr.f32.gmra.mxu0 %v118
    %v315 = vpop.f32.mrf.mxu0
    %v316 = vadd.f32 %v61, %v315
    %v317 = vpop.f32.mrf.mxu0
    %318 = vmatprep.mubr.f32.mxu0 0.0
    %319 = vmatmul.mubr.f32.gmra.mxu0 %v121
    %v320 = vpop.f32.mrf.mxu0
    %v321 = vadd.f32 %v61, %v320
    %v322 = vpop.f32.mrf.mxu0
    %323 = vmatprep.mubr.f32.mxu0 0.0
    %324 = vmatmul.mubr.f32.gmra.mxu0 %v124
    %v325 = vpop.f32.mrf.mxu0
    %v326 = vadd.f32 %v61, %v325
    %v327 = vpop.f32.mrf.mxu0
    %328 = vmatprep.mubr.f32.mxu0 0.0
    %329 = vmatmul.mubr.f32.gmra.mxu0 %v127
    %v330 = vpop.f32.mrf.mxu0
    %v331 = vadd.f32 %v61, %v330
    %v332 = vpop.f32.mrf.mxu0
    %333 = vmatprep.mubr.f32.mxu0 0.0
    %334 = vmatmul.mubr.f32.gmra.mxu0 %v130
    %v335 = vpop.f32.mrf.mxu0
    %v336 = vadd.f32 %v61, %v335
    %v337 = vpop.f32.mrf.mxu0
    %338 = vmatprep.mubr.f32.mxu0 0.0
    %339 = vmatmul.mubr.f32.gmra.mxu0 %v133
    %v340 = vpop.f32.mrf.mxu0
    %v341 = vadd.f32 %v61, %v340
    %v342 = vpop.f32.mrf.mxu0
    %343 = vmatprep.mubr.f32.mxu0 0.0
    %344 = vmatmul.mubr.f32.gmra.mxu0 %v136
    %v345 = vpop.f32.mrf.mxu0
    %v346 = vadd.f32 %v61, %v345
    %v347 = vpop.f32.mrf.mxu0
    %348 = vmatprep.mubr.f32.mxu0 0.0
    %349 = vmatmul.mubr.f32.gmra.mxu0 %v139
    %v350 = vpop.f32.mrf.mxu0
    %v351 = vadd.f32 %v61, %v350
    %v352 = vpop.f32.mrf.mxu0
    %353 = vmatprep.mubr.f32.mxu0 0.0
    %354 = vmatmul.mubr.f32.gmra.mxu0 %v142
    %v355 = vpop.f32.mrf.mxu0
    %v356 = vadd.f32 %v61, %v355
    %v357 = vpop.f32.mrf.mxu0
    %358 = vmatprep.mubr.f32.mxu0 0.0
    %359 = vmatmul.mubr.f32.gmra.mxu0 %v145
    %v360 = vpop.f32.mrf.mxu0
    %v361 = vadd.f32 %v61, %v360
    %v362 = vpop.f32.mrf.mxu0
    %363 = vmatprep.mubr.f32.mxu0 0.0
    %364 = vmatmul.mubr.f32.gmra.mxu0 %v148
    %v365 = vpop.f32.mrf.mxu0
    %v366 = vadd.f32 %v61, %v365
    %v367 = vpop.f32.mrf.mxu0
    %368 = vmatprep.mubr.f32.mxu0 0.0
    %369 = vmatmul.mubr.f32.gmra.mxu0 %v151
    %v370 = vpop.f32.mrf.mxu0
    %v371 = vadd.f32 %v61, %v370
    %v372 = vpop.f32.mrf.mxu0
    %373 = vmatprep.mubr.f32.mxu0 0.0
    %374 = vmatmul.mubr.f32.gmra.mxu0 %v154
    %v375 = vpop.f32.mrf.mxu0
    %v376 = vadd.f32 %v61, %v375
    %v377 = vpop.f32.mrf.mxu0
    %378 = vmatprep.mubr.f32.mxu0 0.0
    %379 = vmatmul.mubr.f32.gmra.mxu0 %v157
    %v380 = vpop.f32.mrf.mxu0
    %v381 = vadd.f32 %v61, %v380
    %v382 = vpop.f32.mrf.mxu0
    %383 = vdwg.mxu0
    %v384 = vmax.f32 %v226, 0.0
    %v385 = vmax.f32 %v231, 0.0
    %v386 = vmax.f32 %v236, 0.0
    %v387 = vmax.f32 %v241, 0.0
    %v388 = vmax.f32 %v246, 0.0
    %v389 = vmax.f32 %v251, 0.0
    %v390 = vmax.f32 %v256, 0.0
    %v391 = vmax.f32 %v261, 0.0
    %v392 = vmax.f32 %v266, 0.0
    %v393 = vmax.f32 %v271, 0.0
    %v394 = vmax.f32 %v276, 0.0
    %v395 = vmax.f32 %v281, 0.0
    %v396 = vmax.f32 %v286, 0.0
    %v397 = vmax.f32 %v291, 0.0
    %v398 = vmax.f32 %v296, 0.0
    %v399 = vmax.f32 %v301, 0.0
    %v400 = vmax.f32 %v306, 0.0
    %v401 = vmax.f32 %v311, 0.0
    %v402 = vmax.f32 %v316, 0.0
    %v403 = vmax.f32 %v321, 0.0
    %v404 = vmax.f32 %v326, 0.0
    %v405 = vmax.f32 %v331, 0.0
    %v406 = vmax.f32 %v336, 0.0
    %v407 = vmax.f32 %v341, 0.0
    %v408 = vmax.f32 %v346, 0.0
    %v409 = vmax.f32 %v351, 0.0
    %v410 = vmax.f32 %v356, 0.0
    %v411 = vmax.f32 %v361, 0.0
    %v412 = vmax.f32 %v366, 0.0
    %v413 = vmax.f32 %v371, 0.0
    %v414 = vmax.f32 %v376, 0.0
    %v415 = vmax.f32 %v381, 0.0
    %v416 = vld [vmem:[%s2] sm:$0xff]
    %v417 = vld [vmem:[%s2 + $0x8] sm:$0xff]
    %v418 = vld [vmem:[%s2 + $0x10] sm:$0xff]
    %v419 = vld [vmem:[%s2 + $0x18] sm:$0xff]
    %v420 = vld [vmem:[%s2 + $0x20] sm:$0xff]
    %v421 = vld [vmem:[%s2 + $0x28] sm:$0xff]
    %v422 = vld [vmem:[%s2 + $0x30] sm:$0xff]
    %v423 = vld [vmem:[%s2 + $0x38] sm:$0xff]
    %v424 = vld [vmem:[%s2 + $0x40] sm:$0xff]
    %v425 = vld [vmem:[%s2 + $0x48] sm:$0xff]
    %v426 = vld [vmem:[%s2 + $0x50] sm:$0xff]
    %v427 = vld [vmem:[%s2 + $0x58] sm:$0xff]
    %v428 = vld [vmem:[%s2 + $0x60] sm:$0xff]
    %v429 = vld [vmem:[%s2 + $0x68] sm:$0xff]
    %v430 = vld [vmem:[%s2 + $0x70] sm:$0xff]
    %v431 = vld [vmem:[%s2 + $0x78] sm:$0xff]
    %v432 = vlaneseq
    %v433 = vshrl.u32 %v432, 7
    %v434 = vsub.s32 1, %v433
    %v435 = vrot.slane %v53, %v434
    %436 = vmatprep.subr.mxu0 0.0
    %437 = vmatpush1.msra.mxu0 %v431
    %438 = vmatprep.subr.mxu0 0.0
    %439 = vmatpush1.msra.mxu0 %v430
    %440 = vmatprep.subr.mxu0 0.0
    %441 = vmatpush1.msra.mxu0 %v429
    %442 = vmatprep.subr.mxu0 0.0
    %443 = vmatpush1.msra.mxu0 %v428
    %444 = vmatprep.subr.mxu0 0.0
    %445 = vmatpush1.msra.mxu0 %v427
    %446 = vmatprep.subr.mxu0 0.0
    %447 = vmatpush1.msra.mxu0 %v426
    %448 = vmatprep.subr.mxu0 0.0
    %449 = vmatpush1.msra.mxu0 %v425
    %450 = vmatprep.subr.mxu0 0.0
    %451 = vmatpush1.msra.mxu0 %v424
    %452 = vmatprep.subr.mxu0 0.0
    %453 = vmatpush1.msra.mxu0 %v423
    %454 = vmatprep.subr.mxu0 0.0
    %455 = vmatpush1.msra.mxu0 %v422
    %456 = vmatprep.subr.mxu0 0.0
    %457 = vmatpush1.msra.mxu0 %v421
    %458 = vmatprep.subr.mxu0 0.0
    %459 = vmatpush1.msra.mxu0 %v420
    %460 = vmatprep.subr.mxu0 0.0
    %461 = vmatpush1.msra.mxu0 %v419
    %462 = vmatprep.subr.mxu0 0.0
    %463 = vmatpush1.msra.mxu0 %v418
    %464 = vmatprep.subr.mxu0 0.0
    %465 = vmatpush1.msra.mxu0 %v417
    %466 = vmatprep.subr.mxu0 0.0
    %467 = vmatpush1.msra.mxu0 %v416
    %468 = vmatprep.subr.mxu0 0.0
    %469 = vmatpush2.msra.mxu0 0.0
    %470 = vmatprep.subr.mxu0 0.0
    %471 = vmatpush2.msra.mxu0 0.0
    %472 = vmatprep.subr.mxu0 0.0
    %473 = vmatpush2.msra.mxu0 0.0
    %474 = vmatprep.subr.mxu0 0.0
    %475 = vmatpush2.msra.mxu0 0.0
    %476 = vmatprep.subr.mxu0 0.0
    %477 = vmatpush2.msra.mxu0 0.0
    %478 = vmatprep.subr.mxu0 0.0
    %479 = vmatpush2.msra.mxu0 0.0
    %480 = vmatprep.subr.mxu0 0.0
    %481 = vmatpush2.msra.mxu0 0.0
    %482 = vmatprep.subr.mxu0 0.0
    %483 = vmatpush2.msra.mxu0 0.0
    %484 = vmatprep.subr.mxu0 0.0
    %485 = vmatpush2.msra.mxu0 0.0
    %486 = vmatprep.subr.mxu0 0.0
    %487 = vmatpush2.msra.mxu0 0.0
    %488 = vmatprep.subr.mxu0 0.0
    %489 = vmatpush2.msra.mxu0 0.0
    %490 = vmatprep.subr.mxu0 0.0
    %491 = vmatpush2.msra.mxu0 0.0
    %492 = vmatprep.subr.mxu0 0.0
    %493 = vmatpush2.msra.mxu0 0.0
    %494 = vmatprep.subr.mxu0 0.0
    %495 = vmatpush2.msra.mxu0 0.0
    %496 = vmatprep.subr.mxu0 0.0
    %497 = vmatpush2.msra.mxu0 0.0
    %498 = vmatprep.subr.mxu0 0.0
    %499 = vmatpush2.msra.mxu0 0.0
    %500 = vmatprep.mubr.f32.mxu0 0.0
    %501 = vmatmul.mubr.f32.gmra.mxu0 %v384
    %v502 = vpop.f32.mrf.mxu0
    %v503 = vadd.f32 %v435, %v502
    %v504 = vpop.f32.mrf.mxu0
    %505 = vmatprep.mubr.f32.mxu0 0.0
    %506 = vmatmul.mubr.f32.gmra.mxu0 %v385
    %v507 = vpop.f32.mrf.mxu0
    %v508 = vadd.f32 %v435, %v507
    %v509 = vpop.f32.mrf.mxu0
    %510 = vmatprep.mubr.f32.mxu0 0.0
    %511 = vmatmul.mubr.f32.gmra.mxu0 %v386
    %v512 = vpop.f32.mrf.mxu0
    %v513 = vadd.f32 %v435, %v512
    %v514 = vpop.f32.mrf.mxu0
    %515 = vmatprep.mubr.f32.mxu0 0.0
    %516 = vmatmul.mubr.f32.gmra.mxu0 %v387
    %v517 = vpop.f32.mrf.mxu0
    %v518 = vadd.f32 %v435, %v517
    %v519 = vpop.f32.mrf.mxu0
    %520 = vmatprep.mubr.f32.mxu0 0.0
    %521 = vmatmul.mubr.f32.gmra.mxu0 %v388
    %v522 = vpop.f32.mrf.mxu0
    %v523 = vadd.f32 %v435, %v522
    %v524 = vpop.f32.mrf.mxu0
    %525 = vmatprep.mubr.f32.mxu0 0.0
    %526 = vmatmul.mubr.f32.gmra.mxu0 %v389
    %v527 = vpop.f32.mrf.mxu0
    %v528 = vadd.f32 %v435, %v527
    %v529 = vpop.f32.mrf.mxu0
    %530 = vmatprep.mubr.f32.mxu0 0.0
    %531 = vmatmul.mubr.f32.gmra.mxu0 %v390
    %v532 = vpop.f32.mrf.mxu0
    %v533 = vadd.f32 %v435, %v532
    %v534 = vpop.f32.mrf.mxu0
    %535 = vmatprep.mubr.f32.mxu0 0.0
    %536 = vmatmul.mubr.f32.gmra.mxu0 %v391
    %v537 = vpop.f32.mrf.mxu0
    %v538 = vadd.f32 %v435, %v537
    %v539 = vpop.f32.mrf.mxu0
    %540 = vmatprep.mubr.f32.mxu0 0.0
    %541 = vmatmul.mubr.f32.gmra.mxu0 %v392
    %v542 = vpop.f32.mrf.mxu0
    %v543 = vadd.f32 %v435, %v542
    %v544 = vpop.f32.mrf.mxu0
    %545 = vmatprep.mubr.f32.mxu0 0.0
    %546 = vmatmul.mubr.f32.gmra.mxu0 %v393
    %v547 = vpop.f32.mrf.mxu0
    %v548 = vadd.f32 %v435, %v547
    %v549 = vpop.f32.mrf.mxu0
    %550 = vmatprep.mubr.f32.mxu0 0.0
    %551 = vmatmul.mubr.f32.gmra.mxu0 %v394
    %v552 = vpop.f32.mrf.mxu0
    %v553 = vadd.f32 %v435, %v552
    %v554 = vpop.f32.mrf.mxu0
    %555 = vmatprep.mubr.f32.mxu0 0.0
    %556 = vmatmul.mubr.f32.gmra.mxu0 %v395
    %v557 = vpop.f32.mrf.mxu0
    %v558 = vadd.f32 %v435, %v557
    %v559 = vpop.f32.mrf.mxu0
    %560 = vmatprep.mubr.f32.mxu0 0.0
    %561 = vmatmul.mubr.f32.gmra.mxu0 %v396
    %v562 = vpop.f32.mrf.mxu0
    %v563 = vadd.f32 %v435, %v562
    %v564 = vpop.f32.mrf.mxu0
    %565 = vmatprep.mubr.f32.mxu0 0.0
    %566 = vmatmul.mubr.f32.gmra.mxu0 %v397
    %v567 = vpop.f32.mrf.mxu0
    %v568 = vadd.f32 %v435, %v567
    %v569 = vpop.f32.mrf.mxu0
    %570 = vmatprep.mubr.f32.mxu0 0.0
    %571 = vmatmul.mubr.f32.gmra.mxu0 %v398
    %v572 = vpop.f32.mrf.mxu0
    %v573 = vadd.f32 %v435, %v572
    %v574 = vpop.f32.mrf.mxu0
    %575 = vmatprep.mubr.f32.mxu0 0.0
    %576 = vmatmul.mubr.f32.gmra.mxu0 %v399
    %v577 = vpop.f32.mrf.mxu0
    %v578 = vadd.f32 %v435, %v577
    %v579 = vpop.f32.mrf.mxu0
    %580 = vmatprep.mubr.f32.mxu0 0.0
    %581 = vmatmul.mubr.f32.gmra.mxu0 %v400
    %v582 = vpop.f32.mrf.mxu0
    %v583 = vadd.f32 %v435, %v582
    %v584 = vpop.f32.mrf.mxu0
    %585 = vmatprep.mubr.f32.mxu0 0.0
    %586 = vmatmul.mubr.f32.gmra.mxu0 %v401
    %v587 = vpop.f32.mrf.mxu0
    %v588 = vadd.f32 %v435, %v587
    %v589 = vpop.f32.mrf.mxu0
    %590 = vmatprep.mubr.f32.mxu0 0.0
    %591 = vmatmul.mubr.f32.gmra.mxu0 %v402
    %v592 = vpop.f32.mrf.mxu0
    %v593 = vadd.f32 %v435, %v592
    %v594 = vpop.f32.mrf.mxu0
    %595 = vmatprep.mubr.f32.mxu0 0.0
    %596 = vmatmul.mubr.f32.gmra.mxu0 %v403
    %v597 = vpop.f32.mrf.mxu0
    %v598 = vadd.f32 %v435, %v597
    %v599 = vpop.f32.mrf.mxu0
    %600 = vmatprep.mubr.f32.mxu0 0.0
    %601 = vmatmul.mubr.f32.gmra.mxu0 %v404
    %v602 = vpop.f32.mrf.mxu0
    %v603 = vadd.f32 %v435, %v602
    %v604 = vpop.f32.mrf.mxu0
    %605 = vmatprep.mubr.f32.mxu0 0.0
    %606 = vmatmul.mubr.f32.gmra.mxu0 %v405
    %v607 = vpop.f32.mrf.mxu0
    %v608 = vadd.f32 %v435, %v607
    %v609 = vpop.f32.mrf.mxu0
    %610 = vmatprep.mubr.f32.mxu0 0.0
    %611 = vmatmul.mubr.f32.gmra.mxu0 %v406
    %v612 = vpop.f32.mrf.mxu0
    %v613 = vadd.f32 %v435, %v612
    %v614 = vpop.f32.mrf.mxu0
    %615 = vmatprep.mubr.f32.mxu0 0.0
    %616 = vmatmul.mubr.f32.gmra.mxu0 %v407
    %v617 = vpop.f32.mrf.mxu0
    %v618 = vadd.f32 %v435, %v617
    %v619 = vpop.f32.mrf.mxu0
    %620 = vmatprep.mubr.f32.mxu0 0.0
    %621 = vmatmul.mubr.f32.gmra.mxu0 %v408
    %v622 = vpop.f32.mrf.mxu0
    %v623 = vadd.f32 %v435, %v622
    %v624 = vpop.f32.mrf.mxu0
    %625 = vmatprep.mubr.f32.mxu0 0.0
    %626 = vmatmul.mubr.f32.gmra.mxu0 %v409
    %v627 = vpop.f32.mrf.mxu0
    %v628 = vadd.f32 %v435, %v627
    %v629 = vpop.f32.mrf.mxu0
    %630 = vmatprep.mubr.f32.mxu0 0.0
    %631 = vmatmul.mubr.f32.gmra.mxu0 %v410
    %v632 = vpop.f32.mrf.mxu0
    %v633 = vadd.f32 %v435, %v632
    %v634 = vpop.f32.mrf.mxu0
    %635 = vmatprep.mubr.f32.mxu0 0.0
    %636 = vmatmul.mubr.f32.gmra.mxu0 %v411
    %v637 = vpop.f32.mrf.mxu0
    %v638 = vadd.f32 %v435, %v637
    %v639 = vpop.f32.mrf.mxu0
    %640 = vmatprep.mubr.f32.mxu0 0.0
    %641 = vmatmul.mubr.f32.gmra.mxu0 %v412
    %v642 = vpop.f32.mrf.mxu0
    %v643 = vadd.f32 %v435, %v642
    %v644 = vpop.f32.mrf.mxu0
    %645 = vmatprep.mubr.f32.mxu0 0.0
    %646 = vmatmul.mubr.f32.gmra.mxu0 %v413
    %v647 = vpop.f32.mrf.mxu0
    %v648 = vadd.f32 %v435, %v647
    %v649 = vpop.f32.mrf.mxu0
    %650 = vmatprep.mubr.f32.mxu0 0.0
    %651 = vmatmul.mubr.f32.gmra.mxu0 %v414
    %v652 = vpop.f32.mrf.mxu0
    %v653 = vadd.f32 %v435, %v652
    %v654 = vpop.f32.mrf.mxu0
    %655 = vmatprep.mubr.f32.mxu0 0.0
    %656 = vmatmul.mubr.f32.gmra.mxu0 %v415
    %v657 = vpop.f32.mrf.mxu0
    %v658 = vadd.f32 %v435, %v657
    %v659 = vpop.f32.mrf.mxu0
    %660 = vdwg.mxu0
    %v661 = vmax.f32 %v503, 0.0
    %v662 = vmax.f32 %v508, 0.0
    %v663 = vmax.f32 %v513, 0.0
    %v664 = vmax.f32 %v518, 0.0
    %v665 = vmax.f32 %v523, 0.0
    %v666 = vmax.f32 %v528, 0.0
    %v667 = vmax.f32 %v533, 0.0
    %v668 = vmax.f32 %v538, 0.0
    %v669 = vmax.f32 %v543, 0.0
    %v670 = vmax.f32 %v548, 0.0
    %v671 = vmax.f32 %v553, 0.0
    %v672 = vmax.f32 %v558, 0.0
    %v673 = vmax.f32 %v563, 0.0
    %v674 = vmax.f32 %v568, 0.0
    %v675 = vmax.f32 %v573, 0.0
    %v676 = vmax.f32 %v578, 0.0
    %v677 = vmax.f32 %v583, 0.0
    %v678 = vmax.f32 %v588, 0.0
    %v679 = vmax.f32 %v593, 0.0
    %v680 = vmax.f32 %v598, 0.0
    %v681 = vmax.f32 %v603, 0.0
    %v682 = vmax.f32 %v608, 0.0
    %v683 = vmax.f32 %v613, 0.0
    %v684 = vmax.f32 %v618, 0.0
    %v685 = vmax.f32 %v623, 0.0
    %v686 = vmax.f32 %v628, 0.0
    %v687 = vmax.f32 %v633, 0.0
    %v688 = vmax.f32 %v638, 0.0
    %v689 = vmax.f32 %v643, 0.0
    %v690 = vmax.f32 %v648, 0.0
    %v691 = vmax.f32 %v653, 0.0
    %v692 = vmax.f32 %v658, 0.0
    %v693 = vld [vmem:[%s3] sm:$0xff]
    %v694 = vld [vmem:[%s3 + $0x8] sm:$0xff]
    %v695 = vld [vmem:[%s3 + $0x10] sm:$0xff]
    %v696 = vld [vmem:[%s3 + $0x18] sm:$0xff]
    %v697 = vld [vmem:[%s3 + $0x20] sm:$0xff]
    %v698 = vld [vmem:[%s3 + $0x28] sm:$0xff]
    %v699 = vld [vmem:[%s3 + $0x30] sm:$0xff]
    %v700 = vld [vmem:[%s3 + $0x38] sm:$0xff]
    %v701 = vld [vmem:[%s3 + $0x40] sm:$0xff]
    %v702 = vld [vmem:[%s3 + $0x48] sm:$0xff]
    %v703 = vld [vmem:[%s3 + $0x50] sm:$0xff]
    %v704 = vld [vmem:[%s3 + $0x58] sm:$0xff]
    %v705 = vld [vmem:[%s3 + $0x60] sm:$0xff]
    %v706 = vld [vmem:[%s3 + $0x68] sm:$0xff]
    %v707 = vld [vmem:[%s3 + $0x70] sm:$0xff]
    %v708 = vld [vmem:[%s3 + $0x78] sm:$0xff]
    %v709 = vlaneseq
    %v710 = vshrl.u32 %v709, 7
    %v711 = vsub.s32 2, %v710
    %v712 = vrot.slane %v53, %v711
    %713 = vmatprep.subr.mxu0 0.0
    %714 = vmatpush1.msra.mxu0 %v708
    %715 = vmatprep.subr.mxu0 0.0
    %716 = vmatpush1.msra.mxu0 %v707
    %717 = vmatprep.subr.mxu0 0.0
    %718 = vmatpush1.msra.mxu0 %v706
    %719 = vmatprep.subr.mxu0 0.0
    %720 = vmatpush1.msra.mxu0 %v705
    %721 = vmatprep.subr.mxu0 0.0
    %722 = vmatpush1.msra.mxu0 %v704
    %723 = vmatprep.subr.mxu0 0.0
    %724 = vmatpush1.msra.mxu0 %v703
    %725 = vmatprep.subr.mxu0 0.0
    %726 = vmatpush1.msra.mxu0 %v702
    %727 = vmatprep.subr.mxu0 0.0
    %728 = vmatpush1.msra.mxu0 %v701
    %729 = vmatprep.subr.mxu0 0.0
    %730 = vmatpush1.msra.mxu0 %v700
    %731 = vmatprep.subr.mxu0 0.0
    %732 = vmatpush1.msra.mxu0 %v699
    %733 = vmatprep.subr.mxu0 0.0
    %734 = vmatpush1.msra.mxu0 %v698
    %735 = vmatprep.subr.mxu0 0.0
    %736 = vmatpush1.msra.mxu0 %v697
    %737 = vmatprep.subr.mxu0 0.0
    %738 = vmatpush1.msra.mxu0 %v696
    %739 = vmatprep.subr.mxu0 0.0
    %740 = vmatpush1.msra.mxu0 %v695
    %741 = vmatprep.subr.mxu0 0.0
    %742 = vmatpush1.msra.mxu0 %v694
    %743 = vmatprep.subr.mxu0 0.0
    %744 = vmatpush1.msra.mxu0 %v693
    %745 = vmatprep.subr.mxu0 0.0
    %746 = vmatpush2.msra.mxu0 0.0
    %747 = vmatprep.subr.mxu0 0.0
    %748 = vmatpush2.msra.mxu0 0.0
    %749 = vmatprep.subr.mxu0 0.0
    %750 = vmatpush2.msra.mxu0 0.0
    %751 = vmatprep.subr.mxu0 0.0
    %752 = vmatpush2.msra.mxu0 0.0
    %753 = vmatprep.subr.mxu0 0.0
    %754 = vmatpush2.msra.mxu0 0.0
    %755 = vmatprep.subr.mxu0 0.0
    %756 = vmatpush2.msra.mxu0 0.0
    %757 = vmatprep.subr.mxu0 0.0
    %758 = vmatpush2.msra.mxu0 0.0
    %759 = vmatprep.subr.mxu0 0.0
    %760 = vmatpush2.msra.mxu0 0.0
    %761 = vmatprep.subr.mxu0 0.0
    %762 = vmatpush2.msra.mxu0 0.0
    %763 = vmatprep.subr.mxu0 0.0
    %764 = vmatpush2.msra.mxu0 0.0
    %765 = vmatprep.subr.mxu0 0.0
    %766 = vmatpush2.msra.mxu0 0.0
    %767 = vmatprep.subr.mxu0 0.0
    %768 = vmatpush2.msra.mxu0 0.0
    %769 = vmatprep.subr.mxu0 0.0
    %770 = vmatpush2.msra.mxu0 0.0
    %771 = vmatprep.subr.mxu0 0.0
    %772 = vmatpush2.msra.mxu0 0.0
    %773 = vmatprep.subr.mxu0 0.0
    %774 = vmatpush2.msra.mxu0 0.0
    %775 = vmatprep.subr.mxu0 0.0
    %776 = vmatpush2.msra.mxu0 0.0
    %777 = vmatprep.mubr.f32.mxu0 0.0
    %778 = vmatmul.mubr.f32.gmra.mxu0 %v661
    %v779 = vpop.f32.mrf.mxu0
    %v780 = vadd.f32 %v712, %v779
    %v781 = vpop.f32.mrf.mxu0
    %782 = vmatprep.mubr.f32.mxu0 0.0
    %783 = vmatmul.mubr.f32.gmra.mxu0 %v662
    %v784 = vpop.f32.mrf.mxu0
    %v785 = vadd.f32 %v712, %v784
    %v786 = vpop.f32.mrf.mxu0
    %787 = vmatprep.mubr.f32.mxu0 0.0
    %788 = vmatmul.mubr.f32.gmra.mxu0 %v663
    %v789 = vpop.f32.mrf.mxu0
    %v790 = vadd.f32 %v712, %v789
    %v791 = vpop.f32.mrf.mxu0
    %792 = vmatprep.mubr.f32.mxu0 0.0
    %793 = vmatmul.mubr.f32.gmra.mxu0 %v664
    %v794 = vpop.f32.mrf.mxu0
    %v795 = vadd.f32 %v712, %v794
    %v796 = vpop.f32.mrf.mxu0
    %797 = vmatprep.mubr.f32.mxu0 0.0
    %798 = vmatmul.mubr.f32.gmra.mxu0 %v665
    %v799 = vpop.f32.mrf.mxu0
    %v800 = vadd.f32 %v712, %v799
    %v801 = vpop.f32.mrf.mxu0
    %802 = vmatprep.mubr.f32.mxu0 0.0
    %803 = vmatmul.mubr.f32.gmra.mxu0 %v666
    %v804 = vpop.f32.mrf.mxu0
    %v805 = vadd.f32 %v712, %v804
    %v806 = vpop.f32.mrf.mxu0
    %807 = vmatprep.mubr.f32.mxu0 0.0
    %808 = vmatmul.mubr.f32.gmra.mxu0 %v667
    %v809 = vpop.f32.mrf.mxu0
    %v810 = vadd.f32 %v712, %v809
    %v811 = vpop.f32.mrf.mxu0
    %812 = vmatprep.mubr.f32.mxu0 0.0
    %813 = vmatmul.mubr.f32.gmra.mxu0 %v668
    %v814 = vpop.f32.mrf.mxu0
    %v815 = vadd.f32 %v712, %v814
    %v816 = vpop.f32.mrf.mxu0
    %817 = vmatprep.mubr.f32.mxu0 0.0
    %818 = vmatmul.mubr.f32.gmra.mxu0 %v669
    %v819 = vpop.f32.mrf.mxu0
    %v820 = vadd.f32 %v712, %v819
    %v821 = vpop.f32.mrf.mxu0
    %822 = vmatprep.mubr.f32.mxu0 0.0
    %823 = vmatmul.mubr.f32.gmra.mxu0 %v670
    %v824 = vpop.f32.mrf.mxu0
    %v825 = vadd.f32 %v712, %v824
    %v826 = vpop.f32.mrf.mxu0
    %827 = vmatprep.mubr.f32.mxu0 0.0
    %828 = vmatmul.mubr.f32.gmra.mxu0 %v671
    %v829 = vpop.f32.mrf.mxu0
    %v830 = vadd.f32 %v712, %v829
    %v831 = vpop.f32.mrf.mxu0
    %832 = vmatprep.mubr.f32.mxu0 0.0
    %833 = vmatmul.mubr.f32.gmra.mxu0 %v672
    %v834 = vpop.f32.mrf.mxu0
    %v835 = vadd.f32 %v712, %v834
    %v836 = vpop.f32.mrf.mxu0
    %837 = vmatprep.mubr.f32.mxu0 0.0
    %838 = vmatmul.mubr.f32.gmra.mxu0 %v673
    %v839 = vpop.f32.mrf.mxu0
    %v840 = vadd.f32 %v712, %v839
    %v841 = vpop.f32.mrf.mxu0
    %842 = vmatprep.mubr.f32.mxu0 0.0
    %843 = vmatmul.mubr.f32.gmra.mxu0 %v674
    %v844 = vpop.f32.mrf.mxu0
    %v845 = vadd.f32 %v712, %v844
    %v846 = vpop.f32.mrf.mxu0
    %847 = vmatprep.mubr.f32.mxu0 0.0
    %848 = vmatmul.mubr.f32.gmra.mxu0 %v675
    %v849 = vpop.f32.mrf.mxu0
    %v850 = vadd.f32 %v712, %v849
    %v851 = vpop.f32.mrf.mxu0
    %852 = vmatprep.mubr.f32.mxu0 0.0
    %853 = vmatmul.mubr.f32.gmra.mxu0 %v676
    %v854 = vpop.f32.mrf.mxu0
    %v855 = vadd.f32 %v712, %v854
    %v856 = vpop.f32.mrf.mxu0
    %857 = vmatprep.mubr.f32.mxu0 0.0
    %858 = vmatmul.mubr.f32.gmra.mxu0 %v677
    %v859 = vpop.f32.mrf.mxu0
    %v860 = vadd.f32 %v712, %v859
    %v861 = vpop.f32.mrf.mxu0
    %862 = vmatprep.mubr.f32.mxu0 0.0
    %863 = vmatmul.mubr.f32.gmra.mxu0 %v678
    %v864 = vpop.f32.mrf.mxu0
    %v865 = vadd.f32 %v712, %v864
    %v866 = vpop.f32.mrf.mxu0
    %867 = vmatprep.mubr.f32.mxu0 0.0
    %868 = vmatmul.mubr.f32.gmra.mxu0 %v679
    %v869 = vpop.f32.mrf.mxu0
    %v870 = vadd.f32 %v712, %v869
    %v871 = vpop.f32.mrf.mxu0
    %872 = vmatprep.mubr.f32.mxu0 0.0
    %873 = vmatmul.mubr.f32.gmra.mxu0 %v680
    %v874 = vpop.f32.mrf.mxu0
    %v875 = vadd.f32 %v712, %v874
    %v876 = vpop.f32.mrf.mxu0
    %877 = vmatprep.mubr.f32.mxu0 0.0
    %878 = vmatmul.mubr.f32.gmra.mxu0 %v681
    %v879 = vpop.f32.mrf.mxu0
    %v880 = vadd.f32 %v712, %v879
    %v881 = vpop.f32.mrf.mxu0
    %882 = vmatprep.mubr.f32.mxu0 0.0
    %883 = vmatmul.mubr.f32.gmra.mxu0 %v682
    %v884 = vpop.f32.mrf.mxu0
    %v885 = vadd.f32 %v712, %v884
    %v886 = vpop.f32.mrf.mxu0
    %887 = vmatprep.mubr.f32.mxu0 0.0
    %888 = vmatmul.mubr.f32.gmra.mxu0 %v683
    %v889 = vpop.f32.mrf.mxu0
    %v890 = vadd.f32 %v712, %v889
    %v891 = vpop.f32.mrf.mxu0
    %892 = vmatprep.mubr.f32.mxu0 0.0
    %893 = vmatmul.mubr.f32.gmra.mxu0 %v684
    %v894 = vpop.f32.mrf.mxu0
    %v895 = vadd.f32 %v712, %v894
    %v896 = vpop.f32.mrf.mxu0
    %897 = vmatprep.mubr.f32.mxu0 0.0
    %898 = vmatmul.mubr.f32.gmra.mxu0 %v685
    %v899 = vpop.f32.mrf.mxu0
    %v900 = vadd.f32 %v712, %v899
    %v901 = vpop.f32.mrf.mxu0
    %902 = vmatprep.mubr.f32.mxu0 0.0
    %903 = vmatmul.mubr.f32.gmra.mxu0 %v686
    %v904 = vpop.f32.mrf.mxu0
    %v905 = vadd.f32 %v712, %v904
    %v906 = vpop.f32.mrf.mxu0
    %907 = vmatprep.mubr.f32.mxu0 0.0
    %908 = vmatmul.mubr.f32.gmra.mxu0 %v687
    %v909 = vpop.f32.mrf.mxu0
    %v910 = vadd.f32 %v712, %v909
    %v911 = vpop.f32.mrf.mxu0
    %912 = vmatprep.mubr.f32.mxu0 0.0
    %913 = vmatmul.mubr.f32.gmra.mxu0 %v688
    %v914 = vpop.f32.mrf.mxu0
    %v915 = vadd.f32 %v712, %v914
    %v916 = vpop.f32.mrf.mxu0
    %917 = vmatprep.mubr.f32.mxu0 0.0
    %918 = vmatmul.mubr.f32.gmra.mxu0 %v689
    %v919 = vpop.f32.mrf.mxu0
    %v920 = vadd.f32 %v712, %v919
    %v921 = vpop.f32.mrf.mxu0
    %922 = vmatprep.mubr.f32.mxu0 0.0
    %923 = vmatmul.mubr.f32.gmra.mxu0 %v690
    %v924 = vpop.f32.mrf.mxu0
    %v925 = vadd.f32 %v712, %v924
    %v926 = vpop.f32.mrf.mxu0
    %927 = vmatprep.mubr.f32.mxu0 0.0
    %928 = vmatmul.mubr.f32.gmra.mxu0 %v691
    %v929 = vpop.f32.mrf.mxu0
    %v930 = vadd.f32 %v712, %v929
    %v931 = vpop.f32.mrf.mxu0
    %932 = vmatprep.mubr.f32.mxu0 0.0
    %933 = vmatmul.mubr.f32.gmra.mxu0 %v692
    %v934 = vpop.f32.mrf.mxu0
    %v935 = vadd.f32 %v712, %v934
    %v936 = vpop.f32.mrf.mxu0
    %937 = vdwg.mxu0
    %v938 = vlaneseq
    %v939 = vand.u32 %v938, 127
    %vm940 = vcmp.ge.s32.totalorder %v939, 4
    %vm941 = vcmp.lt.s32.totalorder %v939, 8
    %vm942 = vmand %vm940, %vm941
    %v943 = vmul.f32 %v780, 1.442695
    %v944 = vpow.pop %v943
    %v945 = vmul.f32 %v785, 1.442695
    %v946 = vpow.pop %v945
    %v947 = vmul.f32 %v790, 1.442695
    %v948 = vpow.pop %v947
    %v949 = vmul.f32 %v795, 1.442695
    %v950 = vpow.pop %v949
    %v951 = vmul.f32 %v800, 1.442695
    %v952 = vpow.pop %v951
    %v953 = vmul.f32 %v805, 1.442695
    %v954 = vpow.pop %v953
    %v955 = vmul.f32 %v810, 1.442695
    %v956 = vpow.pop %v955
    %v957 = vmul.f32 %v815, 1.442695
    %v958 = vpow.pop %v957
    %v959 = vmul.f32 %v820, 1.442695
    %v960 = vpow.pop %v959
    %v961 = vmul.f32 %v825, 1.442695
    %v962 = vpow.pop %v961
    %v963 = vmul.f32 %v830, 1.442695
    %v964 = vpow.pop %v963
    %v965 = vmul.f32 %v835, 1.442695
    %v966 = vpow.pop %v965
    %v967 = vmul.f32 %v840, 1.442695
    %v968 = vpow.pop %v967
    %v969 = vmul.f32 %v845, 1.442695
    %v970 = vpow.pop %v969
    %v971 = vmul.f32 %v850, 1.442695
    %v972 = vpow.pop %v971
    %v973 = vmul.f32 %v855, 1.442695
    %v974 = vpow.pop %v973
    %v975 = vmul.f32 %v860, 1.442695
    %v976 = vpow.pop %v975
    %v977 = vmul.f32 %v865, 1.442695
    %v978 = vpow.pop %v977
    %v979 = vmul.f32 %v870, 1.442695
    %v980 = vpow.pop %v979
    %v981 = vmul.f32 %v875, 1.442695
    %v982 = vpow.pop %v981
    %v983 = vmul.f32 %v880, 1.442695
    %v984 = vpow.pop %v983
    %v985 = vmul.f32 %v885, 1.442695
    %v986 = vpow.pop %v985
    %v987 = vmul.f32 %v890, 1.442695
    %v988 = vpow.pop %v987
    %v989 = vmul.f32 %v895, 1.442695
    %v990 = vpow.pop %v989
    %v991 = vmul.f32 %v900, 1.442695
    %v992 = vpow.pop %v991
    %v993 = vmul.f32 %v905, 1.442695
    %v994 = vpow.pop %v993
    %v995 = vmul.f32 %v910, 1.442695
    %v996 = vpow.pop %v995
    %v997 = vmul.f32 %v915, 1.442695
    %v998 = vpow.pop %v997
    %v999 = vmul.f32 %v920, 1.442695
    %v1000 = vpow.pop %v999
    %v1001 = vmul.f32 %v925, 1.442695
    %v1002 = vpow.pop %v1001
    %v1003 = vmul.f32 %v930, 1.442695
    %v1004 = vpow.pop %v1003
    %v1005 = vmul.f32 %v935, 1.442695
    %v1006 = vpow.pop %v1005
    %v1007 = vsel %vm942, %v944, %v780
    %v1008 = vsel %vm942, %v946, %v785
    %v1009 = vsel %vm942, %v948, %v790
    %v1010 = vsel %vm942, %v950, %v795
    %v1011 = vsel %vm942, %v952, %v800
    %v1012 = vsel %vm942, %v954, %v805
    %v1013 = vsel %vm942, %v956, %v810
    %v1014 = vsel %vm942, %v958, %v815
    %v1015 = vsel %vm942, %v960, %v820
    %v1016 = vsel %vm942, %v962, %v825
    %v1017 = vsel %vm942, %v964, %v830
    %v1018 = vsel %vm942, %v966, %v835
    %v1019 = vsel %vm942, %v968, %v840
    %v1020 = vsel %vm942, %v970, %v845
    %v1021 = vsel %vm942, %v972, %v850
    %v1022 = vsel %vm942, %v974, %v855
    %v1023 = vsel %vm942, %v976, %v860
    %v1024 = vsel %vm942, %v978, %v865
    %v1025 = vsel %vm942, %v980, %v870
    %v1026 = vsel %vm942, %v982, %v875
    %v1027 = vsel %vm942, %v984, %v880
    %v1028 = vsel %vm942, %v986, %v885
    %v1029 = vsel %vm942, %v988, %v890
    %v1030 = vsel %vm942, %v990, %v895
    %v1031 = vsel %vm942, %v992, %v900
    %v1032 = vsel %vm942, %v994, %v905
    %v1033 = vsel %vm942, %v996, %v910
    %v1034 = vsel %vm942, %v998, %v915
    %v1035 = vsel %vm942, %v1000, %v920
    %v1036 = vsel %vm942, %v1002, %v925
    %v1037 = vsel %vm942, %v1004, %v930
    %v1038 = vsel %vm942, %v1006, %v935
    %1039 = vst [vmem:[#allocation2] sm:$0xff] %v1007
    %1040 = vst [vmem:[#allocation2 + $0x8] sm:$0xff] %v1008
    %1041 = vst [vmem:[#allocation2 + $0x10] sm:$0xff] %v1009
    %1042 = vst [vmem:[#allocation2 + $0x18] sm:$0xff] %v1010
    %1043 = vst [vmem:[#allocation2 + $0x20] sm:$0xff] %v1011
    %1044 = vst [vmem:[#allocation2 + $0x28] sm:$0xff] %v1012
    %1045 = vst [vmem:[#allocation2 + $0x30] sm:$0xff] %v1013
    %1046 = vst [vmem:[#allocation2 + $0x38] sm:$0xff] %v1014
    %1047 = vst [vmem:[#allocation2 + $0x40] sm:$0xff] %v1015
    %1048 = vst [vmem:[#allocation2 + $0x48] sm:$0xff] %v1016
    %1049 = vst [vmem:[#allocation2 + $0x50] sm:$0xff] %v1017
    %1050 = vst [vmem:[#allocation2 + $0x58] sm:$0xff] %v1018
    %1051 = vst [vmem:[#allocation2 + $0x60] sm:$0xff] %v1019
    %1052 = vst [vmem:[#allocation2 + $0x68] sm:$0xff] %v1020
    %1053 = vst [vmem:[#allocation2 + $0x70] sm:$0xff] %v1021
    %1054 = vst [vmem:[#allocation2 + $0x78] sm:$0xff] %v1022
    %1055 = vst [vmem:[#allocation2 + $0x80] sm:$0xff] %v1023
    %1056 = vst [vmem:[#allocation2 + $0x88] sm:$0xff] %v1024
    %1057 = vst [vmem:[#allocation2 + $0x90] sm:$0xff] %v1025
    %1058 = vst [vmem:[#allocation2 + $0x98] sm:$0xff] %v1026
    %1059 = vst [vmem:[#allocation2 + $0xa0] sm:$0xff] %v1027
    %1060 = vst [vmem:[#allocation2 + $0xa8] sm:$0xff] %v1028
    %1061 = vst [vmem:[#allocation2 + $0xb0] sm:$0xff] %v1029
    %1062 = vst [vmem:[#allocation2 + $0xb8] sm:$0xff] %v1030
    %1063 = vst [vmem:[#allocation2 + $0xc0] sm:$0xff] %v1031
    %1064 = vst [vmem:[#allocation2 + $0xc8] sm:$0xff] %v1032
    %1065 = vst [vmem:[#allocation2 + $0xd0] sm:$0xff] %v1033
    %1066 = vst [vmem:[#allocation2 + $0xd8] sm:$0xff] %v1034
    %1067 = vst [vmem:[#allocation2 + $0xe0] sm:$0xff] %v1035
    %1068 = vst [vmem:[#allocation2 + $0xe8] sm:$0xff] %v1036
    %1069 = vst [vmem:[#allocation2 + $0xf0] sm:$0xff] %v1037
    %1070 = vst [vmem:[#allocation2 + $0xf8] sm:$0xff] %v1038
    // Predicated region
    $region22: #{tpu_custom_call.1} parent=1 // pred_check
      _
    $region23: #{tpu_custom_call.1} parent=1 // pred_check_branch
      %1072 = sbr.rel (0) target = $region25
    $region24: #{tpu_custom_call.1} parent=1 // pred_region
      %s1074 = ssub.s32 4096, 4096
      %1075 = vsyncadd [#allocation3], %s1074
      %s1076 = sshll.u32 [#allocation2], 4
      %s1077 = int_to_ptr.vmem [resolvable:$true] %s1076
      %1082 = dma.vmem_to_hbm [thread:$0]  %s1077, 4096, %s5, [#allocation3], 128, 128, 8
    $region25: #{tpu_custom_call.1} parent=1 // pred_fallthru
      _
    // Predicated region
    $region26: #{tpu_custom_call.1} parent=1 // pred_check
      _
    $region27: #{tpu_custom_call.1} parent=1 // pred_check_branch
      %1084 = sbr.rel (0) target = $region29
    $region28: #{tpu_custom_call.1} parent=1 // pred_region
      %1085 = dma.done [#allocation3], 4096
    $region29: #{tpu_custom_call.1} parent=1 // pred_fallthru
      _
    %1086 = vsyncpa [#allocation3], 1

</llo_original>
